<compile_context>
chip_gen: v6e
topology: v6e:2x2x1
jax: 0.10.0
libtpu: 0.0.40
codegen_flags: <defaults>
</compile_context>

<pallas_src>
import jax
import jax.numpy as jnp
from jax.experimental import pallas as pl
from jax.experimental.pallas import tpu as pltpu


_LANE_COLS = 512                      # lane-dense last dim (multiple of 128 -> unmasked vst)
_TARGET_TILE_BYTES = 2 * 1024 * 1024  # ~2 MiB per tile; 3 arrays x 2 buffers ~= 12 MiB VMEM


def _sublane_min(dtype):
    """Minimum second-to-last tile dim for the dtype's packing."""
    return {4: 8, 2: 16, 1: 32}.get(jnp.dtype(dtype).itemsize, 8)


def _combination_kernel(scalars_ref, p1_ref, p2_ref, o_ref):
    # scalars_ref (SMEM, f32): [alpha, 1 - alpha] — hoisted out of the tile body.
    a = scalars_ref[0]
    one_minus_a = scalars_ref[1]
    res = one_minus_a * p1_ref[...].astype(jnp.float32) + a * p2_ref[...].astype(jnp.float32)
    o_ref[...] = res.astype(o_ref.dtype)


def combination_forward(alpha, param1, param2):
    """out = (1 - alpha) * param1 + alpha * param2, elementwise, any shape/dtype."""
    assert param1.shape == param2.shape and param1.dtype == param2.dtype
    orig_shape = param1.shape
    dtype = param1.dtype
    n = param1.size
    itemsize = jnp.dtype(dtype).itemsize
    sub_min = _sublane_min(dtype)

    # Flatten to 1D; we'll view it as a lane-dense (rows, _LANE_COLS) slab.
    flat1 = param1.reshape(-1)
    flat2 = param2.reshape(-1)
    rows = pl.cdiv(n, _LANE_COLS)

    # Pick tile_rows targeting ~2 MiB tiles, aligned to the dtype's sublane minimum,
    # and never larger than the (sublane-aligned) number of rows.
    tile_rows = max(sub_min, _TARGET_TILE_BYTES // (_LANE_COLS * itemsize))
    tile_rows = (tile_rows // sub_min) * sub_min
    tile_rows = min(tile_rows, pl.cdiv(rows, sub_min) * sub_min)

    rows_padded = pl.cdiv(rows, tile_rows) * tile_rows
    grid = rows_padded // tile_rows

    # v7x has 2 TensorCores: prefer an even grid length so both cores get work.
    if grid > 1 and grid % 2 == 1 and tile_rows >= 2 * sub_min and (tile_rows // 2) % sub_min == 0:
        tile_rows //= 2
        grid = rows_padded // tile_rows

    n_padded = rows_padded * _LANE_COLS
    if n_padded != n:
        flat1 = jnp.pad(flat1, (0, n_padded - n))
        flat2 = jnp.pad(flat2, (0, n_padded - n))
    p1 = flat1.reshape(rows_padded, _LANE_COLS)
    p2 = flat2.reshape(rows_padded, _LANE_COLS)

    a32 = jnp.asarray(alpha, dtype=jnp.float32)
    scalars = jnp.stack([a32, jnp.float32(1.0) - a32])  # [alpha, 1 - alpha]

    out = pl.pallas_call(
        _combination_kernel,
        out_shape=jax.ShapeDtypeStruct((rows_padded, _LANE_COLS), dtype),
        grid=(grid,),
        in_specs=[
            pl.BlockSpec(memory_space=pltpu.MemorySpace.SMEM),       # [alpha, 1-alpha]
            pl.BlockSpec((tile_rows, _LANE_COLS), lambda i: (i, 0)),  # param1 tile
            pl.BlockSpec((tile_rows, _LANE_COLS), lambda i: (i, 0)),  # param2 tile
        ],
        out_specs=pl.BlockSpec((tile_rows, _LANE_COLS), lambda i: (i, 0)),
        compiler_params=pltpu.CompilerParams(
            dimension_semantics=("parallel",),
            vmem_limit_bytes=32 * 1024 * 1024,
        ),
    )(scalars, p1, p2)

    return out.reshape(-1)[:n].reshape(orig_shape)


if __name__ == "__main__":
    key = jax.random.PRNGKey(0)
    k1, k2 = jax.random.split(key)

    # Small NCHW inputs consistent with the module's elementwise forward.
    B, C, H, W = 2, 4, 16, 16
    param1 = jax.random.normal(k1, (B, C, H, W), dtype=jnp.float32)
    param2 = jax.random.normal(k2, (B, C, H, W), dtype=jnp.float32)

    # Deterministic parameter init, mirroring nn.Parameter(torch.tensor(0.5)).
    alpha = jnp.float32(0.5)

    out = combination_forward(alpha, param1, param2)
    out = jax.block_until_ready(out)

    # Reference check (plain JAX)
    ref = (1.0 - alpha) * param1 + alpha * param2
    assert out.shape == ref.shape and out.dtype == ref.dtype
    assert jnp.allclose(out, ref, atol=1e-6, rtol=1e-6)

    # Also exercise a non-lane-aligned, multi-tile shape to validate padding path.
    k3, k4 = jax.random.split(k2)
    odd1 = jax.random.normal(k3, (3, 5, 17, 19), dtype=jnp.float32)
    odd2 = jax.random.normal(k4, (3, 5, 17, 19), dtype=jnp.float32)
    out2 = jax.block_until_ready(combination_forward(alpha, odd1, odd2))
    ref2 = (1.0 - alpha) * odd1 + alpha * odd2
    assert jnp.allclose(out2, ref2, atol=1e-6, rtol=1e-6)

    print("KERNEL_OK")
</pallas_src>

<mosaic_0001>
module attributes {stable_mosaic.version = 11 : i64} {
  func.func @_combination_kernel(%arg0: i32, %arg1: memref<2xf32, #tpu.memory_space<smem>>, %arg2: memref<8x512xf32, #tpu.memory_space<vmem>>, %arg3: memref<8x512xf32, #tpu.memory_space<vmem>>, %arg4: memref<8x512xf32, #tpu.memory_space<vmem>>) attributes {dimension_semantics = [#tpu.dimension_semantics<parallel>], iteration_bounds = array<i64: 1>, scalar_prefetch = 0 : i64, scratch_operands = 0 : i64, tpu.core_type = #tpu.core_type<tc>, window_params = [{transform_indices = @transform_0, window_bounds = array<i64: 2>}, {transform_indices = @transform_1, window_bounds = array<i64: 8, 512>}, {transform_indices = @transform_2, window_bounds = array<i64: 8, 512>}, {transform_indices = @transform_3, window_bounds = array<i64: 8, 512>}]} {
    %c0 = arith.constant 0 : index
    %0 = memref.load %arg1[%c0] : memref<2xf32, #tpu.memory_space<smem>>
    %c1 = arith.constant 1 : index
    %1 = memref.load %arg1[%c1] : memref<2xf32, #tpu.memory_space<smem>>
    %c0_0 = arith.constant 0 : index
    %c0_1 = arith.constant 0 : index
    %2 = vector.load %arg2[%c0_0, %c0_1] : memref<8x512xf32, #tpu.memory_space<vmem>>, vector<8x512xf32>
    %3 = vector.broadcast %1 : f32 to vector<8x512xf32>
    %4 = arith.mulf %3, %2 : vector<8x512xf32>
    %c0_2 = arith.constant 0 : index
    %c0_3 = arith.constant 0 : index
    %5 = vector.load %arg3[%c0_2, %c0_3] : memref<8x512xf32, #tpu.memory_space<vmem>>, vector<8x512xf32>
    %6 = vector.broadcast %0 : f32 to vector<8x512xf32>
    %7 = arith.mulf %6, %5 : vector<8x512xf32>
    %8 = arith.addf %4, %7 : vector<8x512xf32>
    %c0_4 = arith.constant 0 : index
    %c0_5 = arith.constant 0 : index
    %9 = vector.load %arg4[%c0_4, %c0_5] : memref<8x512xf32, #tpu.memory_space<vmem>>, vector<8x512xf32>
    tpu.vector_store %arg4[%c0_4, %c0_5], %8 {strides = array<i32>} : memref<8x512xf32, #tpu.memory_space<vmem>>, vector<8x512xf32>,
    return
  }
  func.func @transform_0(%arg0: i32) -> i32 {
    %c0_i32 = arith.constant 0 : i32
    %c0_i32_0 = arith.constant 0 : i32
    return %c0_i32 : i32
  }
  func.func @transform_1(%arg0: i32) -> (i32, i32) {
    %c0_i32 = arith.constant 0 : i32
    %c0_i32_0 = arith.constant 0 : i32
    return %arg0, %c0_i32 : i32, i32
  }
  func.func @transform_2(%arg0: i32) -> (i32, i32) {
    %c0_i32 = arith.constant 0 : i32
    %c0_i32_0 = arith.constant 0 : i32
    return %arg0, %c0_i32 : i32, i32
  }
  func.func @transform_3(%arg0: i32) -> (i32, i32) {
    %c0_i32 = arith.constant 0 : i32
    %c0_i32_0 = arith.constant 0 : i32
    return %arg0, %c0_i32 : i32, i32
  }
}

</mosaic_0001>

<llo_original>
// kernel: tpu_custom_call.1
$region0: #{tpu_custom_call.1}
  #allocation0 [shape = 'u32[]', space=smem, size = 0x4, offset = 0x4, fixed_abs, tag = 'smem constant byte address 0x4 - core index']
  #allocation1 [shape = 'u32[144,128]{1,0:T(1,128)}', space=vmem, size = 0x12000, scoped, tag = 'internal scratch']
  %s0 = inlined_call_operand.hbm [shape: f32[2], index: 0, kind: input, shape index: {}]
  %s1 = inlined_call_operand.hbm [shape: f32[8,512], index: 1, kind: input, shape index: {}]
  %s2 = inlined_call_operand.hbm [shape: f32[8,512], index: 2, kind: input, shape index: {}]
  %s3 = inlined_call_operand.hbm [shape: f32[8,512], index: 3, kind: output, shape index: {}]
  %s4 = sld [smem:[#allocation0]]
  $region34: #{tpu_custom_call.1} parent=0
    _
  %s6 = ssub.s32 1, %s4
  %s7 = scalar_select 0, %s6, %s4
  $region1: #{tpu_custom_call.1} parent=0
    #allocation2 [shape = 'u8[512]{0}', space=smem, size = 0x200, scoped, tag = 'input window, operand 0, single buffered']
    #allocation3 [shape = 's32[1]{0}', space=sflag, size = 0x4, scoped, tag = 'scoped memory for tpu_custom_call.1']
    #allocation4 [shape = 's32[1]{0}', space=sflag, size = 0x4, scoped, tag = 'scoped memory for tpu_custom_call.1']
    #allocation5 [shape = 's32[1]{0}', space=sflag, size = 0x4, scoped, tag = 'scoped memory for tpu_custom_call.1']
    #allocation6 [shape = 'u8[16384]{0}', space=vmem, size = 0x4000, scoped, tag = 'input window, operand 1, single buffered']
    #allocation7 [shape = 'u8[16384]{0}', space=vmem, size = 0x4000, scoped, tag = 'input window, operand 2, single buffered']
    #allocation8 [shape = 's32[1]{0}', space=sflag, size = 0x4, scoped, tag = 'scoped memory for tpu_custom_call.1']
    #allocation9 [shape = 'u8[16384]{0}', space=vmem, size = 0x4000, scoped, tag = 'output window, operand 0, single buffered']
    %8 = vsyncpa [#allocation5], 0
    %9 = vsyncpa [#allocation3], 0
    %10 = vsyncpa [#allocation8], 0
    %11 = vsyncpa [#allocation4], 0
    // Predicated region
    $region2: #{tpu_custom_call.1} parent=1 // pred_check
      _
    $region3: #{tpu_custom_call.1} parent=1 // pred_check_branch
      %13 = sbr.rel (0) target = $region5
    $region4: #{tpu_custom_call.1} parent=1 // pred_region
      %s15 = ssub.s32 16, 16
      %16 = vsyncadd [#allocation5], %s15
      %19 = dma.hbm_to_smem %s0, 16, [#allocation2], [#allocation5]
    $region5: #{tpu_custom_call.1} parent=1 // pred_fallthru
      _
    // Predicated region
    $region6: #{tpu_custom_call.1} parent=1 // pred_check
      _
    $region7: #{tpu_custom_call.1} parent=1 // pred_check_branch
      %21 = sbr.rel (0) target = $region9
    $region8: #{tpu_custom_call.1} parent=1 // pred_region
      %s23 = ssub.s32 512, 512
      %24 = vsyncadd [#allocation3], %s23
      %s26 = sshll.u32 [#allocation6], 4
      %s27 = int_to_ptr.vmem [resolvable:$true] %s26
      %29 = dma.hbm_to_vmem [thread:$0]  %s1, 512, %s27, [#allocation3]
    $region9: #{tpu_custom_call.1} parent=1 // pred_fallthru
      _
    // Predicated region
    $region10: #{tpu_custom_call.1} parent=1 // pred_check
      _
    $region11: #{tpu_custom_call.1} parent=1 // pred_check_branch
      %31 = sbr.rel (0) target = $region13
    $region12: #{tpu_custom_call.1} parent=1 // pred_region
      %s33 = ssub.s32 512, 512
      %34 = vsyncadd [#allocation8], %s33
      %s36 = sshll.u32 [#allocation7], 4
      %s37 = int_to_ptr.vmem [resolvable:$true] %s36
      %39 = dma.hbm_to_vmem [thread:$0]  %s2, 512, %s37, [#allocation8]
    $region13: #{tpu_custom_call.1} parent=1 // pred_fallthru
      _
    // Predicated region
    $region14: #{tpu_custom_call.1} parent=1 // pred_check
      _
    $region15: #{tpu_custom_call.1} parent=1 // pred_check_branch
      %41 = sbr.rel (0) target = $region17
    $region16: #{tpu_custom_call.1} parent=1 // pred_region
      %42 = dma.done [#allocation5], 16
    $region17: #{tpu_custom_call.1} parent=1 // pred_fallthru
      _
    // Predicated region
    $region18: #{tpu_custom_call.1} parent=1 // pred_check
      _
    $region19: #{tpu_custom_call.1} parent=1 // pred_check_branch
      %44 = sbr.rel (0) target = $region21
    $region20: #{tpu_custom_call.1} parent=1 // pred_region
      %45 = dma.done [#allocation3], 512
    $region21: #{tpu_custom_call.1} parent=1 // pred_fallthru
      _
    // Predicated region
    $region22: #{tpu_custom_call.1} parent=1 // pred_check
      _
    $region23: #{tpu_custom_call.1} parent=1 // pred_check_branch
      %47 = sbr.rel (0) target = $region25
    $region24: #{tpu_custom_call.1} parent=1 // pred_region
      %48 = dma.done [#allocation8], 512
    $region25: #{tpu_custom_call.1} parent=1 // pred_fallthru
      _
    %49 = sfence
    %s50 = sld [smem:[#allocation2]]
    %s51 = sld [smem:[#allocation2 + $0x1]]
    %v52 = vld [vmem:[#allocation6] sm:$0xff]
    %v53 = vld [vmem:[#allocation6 + $0x8] sm:$0xff]
    %v54 = vld [vmem:[#allocation6 + $0x10] sm:$0xff]
    %v55 = vld [vmem:[#allocation6 + $0x18] sm:$0xff]
    %v56 = vstv %s51
    %v57 = vmul.f32 %v56, %v52
    %v58 = vmul.f32 %v56, %v53
    %v59 = vmul.f32 %v56, %v54
    %v60 = vmul.f32 %v56, %v55
    %v61 = vld [vmem:[#allocation7] sm:$0xff]
    %v62 = vld [vmem:[#allocation7 + $0x8] sm:$0xff]
    %v63 = vld [vmem:[#allocation7 + $0x10] sm:$0xff]
    %v64 = vld [vmem:[#allocation7 + $0x18] sm:$0xff]
    %v65 = vstv %s50
    %v66 = vmul.f32 %v65, %v61
    %v67 = vmul.f32 %v65, %v62
    %v68 = vmul.f32 %v65, %v63
    %v69 = vmul.f32 %v65, %v64
    %v70 = vadd.f32 %v57, %v66
    %v71 = vadd.f32 %v58, %v67
    %v72 = vadd.f32 %v59, %v68
    %v73 = vadd.f32 %v60, %v69
    %74 = vst [vmem:[#allocation9] sm:$0xff] %v70
    %75 = vst [vmem:[#allocation9 + $0x8] sm:$0xff] %v71
    %76 = vst [vmem:[#allocation9 + $0x10] sm:$0xff] %v72
    %77 = vst [vmem:[#allocation9 + $0x18] sm:$0xff] %v73
    // Predicated region
    $region26: #{tpu_custom_call.1} parent=1 // pred_check
      _
    $region27: #{tpu_custom_call.1} parent=1 // pred_check_branch
      %79 = sbr.rel (0) target = $region29
    $region28: #{tpu_custom_call.1} parent=1 // pred_region
      %s81 = ssub.s32 512, 512
      %82 = vsyncadd [#allocation4], %s81
      %s84 = sshll.u32 [#allocation9], 4
      %s85 = int_to_ptr.vmem [resolvable:$true] %s84
      %87 = dma.vmem_to_hbm [thread:$0]  %s85, 512, %s3, [#allocation4]
    $region29: #{tpu_custom_call.1} parent=1 // pred_fallthru
      _
    // Predicated region
    $region30: #{tpu_custom_call.1} parent=1 // pred_check
      _
    $region31: #{tpu_custom_call.1} parent=1 // pred_check_branch
      %89 = sbr.rel (0) target = $region33
    $region32: #{tpu_custom_call.1} parent=1 // pred_region
      %90 = dma.done [#allocation4], 512
    $region33: #{tpu_custom_call.1} parent=1 // pred_fallthru
      _
    %91 = vsyncpa [#allocation3], 1
    %92 = vsyncpa [#allocation8], 1
    %93 = vsyncpa [#allocation4], 1
    %94 = vsyncpa [#allocation5], 1

</llo_original>
